<compile_context>
chip_gen: v7x
topology: tpu7x:2x2x1
jax: 0.10.0
libtpu: 0.0.40
codegen_flags: <defaults>
</compile_context>

<pallas_src>
import jax
import jax.numpy as jnp
from jax.experimental import pallas as pl
from jax.experimental.pallas import tpu as pltpu


def _round_up(n, m):
    return ((n + m - 1) // m) * m


def _vmem_capacity_bytes():
    """Per-core VMEM capacity; conservative fallback (v7x = 64 MiB/TC)."""
    try:
        return int(pltpu.get_tpu_info().vmem_capacity_bytes)
    except Exception:
        return 64 * 1024 * 1024


def _as_f32(a):
    return a if a.dtype == jnp.float32 else a.astype(jnp.float32)


def _make_simple_kernel(matmul_in_bf16):
    """nk == 1: whole S_inv per step, straight write, no accumulator."""

    def kernel(x_ref, xfit_ref, sinv_ref, out_ref):
        # f32 subtraction even for low-precision inputs (avoids cancellation).
        delta = _as_f32(x_ref[...]) - _as_f32(xfit_ref[...])
        s = _as_f32(sinv_ref[...])
        if matmul_in_bf16:
            t = jnp.dot(delta.astype(jnp.bfloat16), s.astype(jnp.bfloat16),
                        preferred_element_type=jnp.float32)
        else:
            t = jnp.dot(delta, s, preferred_element_type=jnp.float32)
        out_ref[...] = jnp.sum(t * delta, axis=-1, keepdims=True)

    return kernel


def _make_ktile_kernel(matmul_in_bf16):
    """nk > 1: K-tiled reduction with delta hoisted into VMEM scratch."""

    def kernel(x_ref, xfit_ref, sinv_ref, out_ref, delta_ref):
        k = pl.program_id(1)
        tk = sinv_ref.shape[1]

        @pl.when(k == 0)
        def _init():
            # Hoisted: the (tb, D) subtraction (and its x / x_fit loads) happen
            # once per batch tile, not once per k step.
            delta_ref[...] = _as_f32(x_ref[...]) - _as_f32(xfit_ref[...])
            out_ref[...] = jnp.zeros_like(out_ref)

        delta = delta_ref[...]
        s = _as_f32(sinv_ref[...])
        if matmul_in_bf16:
            t = jnp.dot(delta.astype(jnp.bfloat16), s.astype(jnp.bfloat16),
                        preferred_element_type=jnp.float32)
        else:
            # (tb, D) @ (D, tk) on the MXU with f32 accumulation.
            t = jnp.dot(delta, s, preferred_element_type=jnp.float32)

        # Matching column chunk, sliced from the already-materialized delta
        # scratch (no extra x / x_fit loads, no repeated subtract).
        col0 = pl.multiple_of(k * tk, tk)
        d_chunk = delta_ref[:, pl.ds(col0, tk)]

        # Accumulate directly into the VMEM-resident output block (constant
        # block index across k) -- no separate accumulator / finalize copy.
        out_ref[...] += jnp.sum(t * d_chunk, axis=-1, keepdims=True)

    return kernel


def mahalanobis_layer(x, x_fit, s_inv, *, max_block_rows=1024, block_cols=None,
                      vmem_budget_bytes=None, matmul_in_bf16=False):
    """Squared Mahalanobis distance per row: (B, D), (B, D), (D, D) -> (B, 1)."""
    B, D = x.shape
    assert x_fit.shape == (B, D) and s_inv.shape == (D, D)

    in_itemsize = max(jnp.dtype(x.dtype).itemsize, jnp.dtype(x_fit.dtype).itemsize)
    sinv_itemsize = jnp.dtype(s_inv.dtype).itemsize

    # --- Generation-aware budgets (v7x: 64 MiB/TC; v5e/v6e: 128 MiB). --------
    capacity = _vmem_capacity_bytes()
    budget = int(vmem_budget_bytes) if vmem_budget_bytes is not None else int(0.6 * capacity)
    sinv_resident_threshold = capacity // 6   # ~21 MiB on v5e/v6e, ~10 MiB on v7x

    # --- K (S_inv column) tiling: only when S_inv can't stay fully resident. -
    if block_cols is not None:
        assert block_cols == D or (D % block_cols == 0 and block_cols % 128 == 0), (
            "block_cols must equal D or be a multiple of 128 dividing D")
        tk = int(block_cols)
    elif D % 128 != 0 or D * D * sinv_itemsize <= sinv_resident_threshold:
        tk = D
    else:
        tk = 128
        for cand in (1024, 512, 256):
            if D % cand == 0 and 2 * D * cand * sinv_itemsize <= budget // 2:
                tk = cand
                break
    nk = D // tk
    ktiled = nk > 1

    # --- Batch tiling: honest per-row working-set accounting. ----------------
    #   x + x_fit double buffers + f32 delta temp/scratch + matmul temp + out.
    sub = max(8, 32 // in_itemsize)           # sublane multiple per input dtype
    per_row = 4 * D * in_itemsize + 4 * D + 4 * tk + 8
    avail = budget - 2 * D * tk * sinv_itemsize
    rows_budget = max(sub, avail // per_row) if avail > 0 else sub
    tb = int(min(max_block_rows, rows_budget, _round_up(B, sub)))
    if B >= 2 * sub:
        # Keep >=2 batch tiles so the "parallel" axis can feed both v7x cores.
        tb = min(tb, _round_up(-(-B // 2), sub))
    tb = max(sub, (tb // sub) * sub)

    # Pad ragged batches (padded rows are independent per-row garbage, sliced
    # off below).
    Bp = _round_up(B, tb)
    if Bp != B:
        pad = Bp - B
        x = jnp.pad(x, ((0, pad), (0, 0)))
        x_fit = jnp.pad(x_fit, ((0, pad), (0, 0)))

    # Explicit VMEM limit matched to the real working set (+ headroom).
    working_set = (4 * tb * D * in_itemsize        # x + x_fit double buffers
                   + 2 * D * tk * sinv_itemsize    # S_inv double buffer
                   + tb * D * 4                    # f32 delta scratch / temp
                   + tb * tk * 4                   # matmul result temp
                   + 2 * tb * 4)                   # out double buffer
    vmem_limit = int(min(max(working_set * 1.3 + (4 << 20), 32 << 20),
                         0.9 * capacity))

    n_batch_tiles = Bp // tb
    sinv_fetches = n_batch_tiles if ktiled else 1
    cost = pl.CostEstimate(
        flops=2 * Bp * D * D + 3 * Bp * D,
        transcendentals=0,
        bytes_accessed=(2 * Bp * D * in_itemsize
                        + sinv_fetches * D * D * sinv_itemsize
                        + Bp * 4),
    )

    if not ktiled:
        kernel = _make_simple_kernel(matmul_in_bf16)
        grid_spec = pltpu.PrefetchScalarGridSpec(
            num_scalar_prefetch=0,
            grid=(n_batch_tiles,),
            in_specs=[
                pl.BlockSpec((tb, D), lambda i: (i, 0)),     # x tile
                pl.BlockSpec((tb, D), lambda i: (i, 0)),     # x_fit tile
                pl.BlockSpec((D, D), lambda i: (0, 0)),      # S_inv (resident)
            ],
            out_specs=pl.BlockSpec((tb, 1), lambda i: (i, 0)),
        )
        dims = ("parallel",)
    else:
        kernel = _make_ktile_kernel(matmul_in_bf16)
        grid_spec = pltpu.PrefetchScalarGridSpec(
            num_scalar_prefetch=0,
            grid=(n_batch_tiles, nk),
            in_specs=[
                pl.BlockSpec((tb, D), lambda i, k: (i, 0)),  # x tile
                pl.BlockSpec((tb, D), lambda i, k: (i, 0)),  # x_fit tile
                pl.BlockSpec((D, tk), lambda i, k: (0, k)),  # S_inv column chunk
            ],
            out_specs=pl.BlockSpec((tb, 1), lambda i, k: (i, 0)),
            scratch_shapes=[pltpu.VMEM((tb, D), jnp.float32)],   # hoisted delta
        )
        dims = ("parallel", "arbitrary")

    out = pl.pallas_call(
        kernel,
        out_shape=jax.ShapeDtypeStruct((Bp, 1), jnp.float32),
        grid_spec=grid_spec,
        compiler_params=pltpu.CompilerParams(
            dimension_semantics=dims,
            vmem_limit_bytes=vmem_limit,
        ),
        cost_estimate=cost,
    )(x, x_fit, s_inv)

    return out[:B] if Bp != B else out


if __name__ == "__main__":
    def reference(x, x_fit, s_inv):
        delta = x - x_fit
        return jnp.sum((delta @ s_inv) * delta, axis=-1, keepdims=True)

    key = jax.random.PRNGKey(0)

    # Case 1: module-default config -- S_inv = eye(dim), small batch.
    B, D = 8, 32
    k1, k2 = jax.random.split(key)
    x = jax.random.normal(k1, (B, D), dtype=jnp.float32)
    x_fit = jax.random.normal(k2, (B, D), dtype=jnp.float32)
    s_inv = jnp.eye(D, dtype=jnp.float32)   # register_buffer('S_inv', eye(dim))
    out = mahalanobis_layer(x, x_fit, s_inv)
    jax.block_until_ready(out)
    assert out.shape == (B, 1)
    assert jnp.allclose(out, reference(x, x_fit, s_inv), rtol=1e-5, atol=1e-5)

    # Case 2: ragged batch (exercises the pad-to-tile path) + SPD S_inv.
    B2, D2 = 20, 32
    k3, k4, k5 = jax.random.split(k2, 3)
    x2 = jax.random.normal(k3, (B2, D2), dtype=jnp.float32)
    xf2 = jax.random.normal(k4, (B2, D2), dtype=jnp.float32)
    a2 = jax.random.normal(k5, (D2, D2), dtype=jnp.float32)
    s2 = a2 @ a2.T / D2 + jnp.eye(D2)
    out2 = mahalanobis_layer(x2, xf2, s2)
    jax.block_until_ready(out2)
    assert out2.shape == (B2, 1)
    assert jnp.allclose(out2, reference(x2, xf2, s2), rtol=1e-4, atol=1e-3)

    # Case 3: force the K-tiled (reduction-grid + hoisted-delta) path.
    B3, D3 = 16, 256
    k6, k7, k8 = jax.random.split(k5, 3)
    x3 = jax.random.normal(k6, (B3, D3), dtype=jnp.float32)
    xf3 = jax.random.normal(k7, (B3, D3), dtype=jnp.float32)
    a3 = jax.random.normal(k8, (D3, D3), dtype=jnp.float32) / jnp.sqrt(D3)
    s3 = a3 @ a3.T + jnp.eye(D3)
    out3 = mahalanobis_layer(x3, xf3, s3, block_cols=128)
    jax.block_until_ready(out3)
    assert out3.shape == (B3, 1)
    assert jnp.allclose(out3, reference(x3, xf3, s3), rtol=1e-3, atol=1e-2)

    # Case 4: bf16 inputs -- delta computed in f32 in-kernel, sublane=16 tiling.
    B4, D4 = 16, 128
    k9, k10 = jax.random.split(k8)
    x4 = jax.random.normal(k9, (B4, D4), dtype=jnp.float32).astype(jnp.bfloat16)
    xf4 = jax.random.normal(k10, (B4, D4), dtype=jnp.float32).astype(jnp.bfloat16)
    s4 = jnp.eye(D4, dtype=jnp.float32)
    out4 = mahalanobis_layer(x4, xf4, s4)
    jax.block_until_ready(out4)
    ref4 = reference(x4.astype(jnp.float32), xf4.astype(jnp.float32), s4)
    assert out4.shape == (B4, 1)
    assert jnp.allclose(out4, ref4, rtol=1e-3, atol=1e-3)

    print("KERNEL_OK")
</pallas_src>

<mosaic_0001>
module attributes {stable_mosaic.version = 11 : i64} {
  func.func @kernel(%arg0: i32, %arg1: memref<8x32xf32, #tpu.memory_space<vmem>>, %arg2: memref<8x32xf32, #tpu.memory_space<vmem>>, %arg3: memref<32x32xf32, #tpu.memory_space<vmem>>, %arg4: memref<8x1xf32, #tpu.memory_space<vmem>>) attributes {dimension_semantics = [#tpu.dimension_semantics<parallel>], iteration_bounds = array<i64: 1>, scalar_prefetch = 0 : i64, scratch_operands = 0 : i64, tpu.core_type = #tpu.core_type<tc>, window_params = [{transform_indices = @transform_0, window_bounds = array<i64: 8, 32>}, {transform_indices = @transform_1, window_bounds = array<i64: 8, 32>}, {pipeline_mode = #tpu.pipeline_mode<synchronous>, transform_indices = @transform_2, window_bounds = array<i64: 32, 32>}, {transform_indices = @transform_3, window_bounds = array<i64: 8, 1>}]} {
    %c0 = arith.constant 0 : index
    %c0_0 = arith.constant 0 : index
    %0 = vector.load %arg1[%c0, %c0_0] : memref<8x32xf32, #tpu.memory_space<vmem>>, vector<8x32xf32>
    %c0_1 = arith.constant 0 : index
    %c0_2 = arith.constant 0 : index
    %1 = vector.load %arg2[%c0_1, %c0_2] : memref<8x32xf32, #tpu.memory_space<vmem>>, vector<8x32xf32>
    %2 = arith.subf %0, %1 : vector<8x32xf32>
    %c0_3 = arith.constant 0 : index
    %c0_4 = arith.constant 0 : index
    %3 = vector.load %arg3[%c0_3, %c0_4] : memref<32x32xf32, #tpu.memory_space<vmem>>, vector<32x32xf32>
    %cst = arith.constant dense<0.000000e+00> : vector<8x32xf32>
    %4 = tpu.matmul %2, %3, %cst {dimension_numbers = #tpu.dot_dimension_numbers<[1], [0], [0], [1], [0, 0, 1, 1], [], []>} : vector<8x32xf32>, vector<32x32xf32>, vector<8x32xf32> -> vector<8x32xf32>
    %5 = arith.mulf %4, %2 : vector<8x32xf32>
    %cst_5 = arith.constant dense<0.000000e+00> : vector<8xf32>
    %6 = vector.multi_reduction <add>, %5, %cst_5 [1] : vector<8x32xf32> to vector<8xf32>
    %7 = vector.shape_cast %6 : vector<8xf32> to vector<8x1xf32>
    %c0_6 = arith.constant 0 : index
    %c0_7 = arith.constant 0 : index
    %8 = vector.load %arg4[%c0_6, %c0_7] : memref<8x1xf32, #tpu.memory_space<vmem>>, vector<8x1xf32>
    tpu.vector_store %arg4[%c0_6, %c0_7], %7 {strides = array<i32>} : memref<8x1xf32, #tpu.memory_space<vmem>>, vector<8x1xf32>,
    return
  }
  func.func @transform_0(%arg0: i32) -> (i32, i32) {
    %c0_i32 = arith.constant 0 : i32
    %c0_i32_0 = arith.constant 0 : i32
    return %arg0, %c0_i32 : i32, i32
  }
  func.func @transform_1(%arg0: i32) -> (i32, i32) {
    %c0_i32 = arith.constant 0 : i32
    %c0_i32_0 = arith.constant 0 : i32
    return %arg0, %c0_i32 : i32, i32
  }
  func.func @transform_2(%arg0: i32) -> (i32, i32) {
    %c0_i32 = arith.constant 0 : i32
    %c0_i32_0 = arith.constant 0 : i32
    %c0_i32_1 = arith.constant 0 : i32
    return %c0_i32, %c0_i32_0 : i32, i32
  }
  func.func @transform_3(%arg0: i32) -> (i32, i32) {
    %c0_i32 = arith.constant 0 : i32
    %c0_i32_0 = arith.constant 0 : i32
    return %arg0, %c0_i32 : i32, i32
  }
}

</mosaic_0001>

<llo_original>
// kernel: tpu_custom_call.1
$region0: #{tpu_custom_call.1}
  #allocation0 [shape = 'u32[]', space=smem, size = 0x4, offset = 0x4, fixed_abs, tag = 'smem constant byte address 0x4 - core index']
  #allocation1 [shape = 'u32[144,128]{1,0:T(1,128)}', space=vmem, size = 0x12000, scoped, tag = 'internal scratch']
  %s0 = inlined_call_operand.hbm [shape: f32[8,32], index: 0, kind: input, shape index: {}]
  %s1 = inlined_call_operand.hbm [shape: f32[8,32], index: 1, kind: input, shape index: {}]
  %s2 = inlined_call_operand.hbm [shape: f32[32,32], index: 2, kind: input, shape index: {}]
  %s3 = inlined_call_operand.vmem [shape: f32[8,1], index: 3, kind: output, shape index: {}]
  %s4 = sld [smem:[#allocation0]]
  $region34: #{tpu_custom_call.1} parent=0
    _
  %s6 = ssub.s32 1, %s4
  %s7 = scalar_select 0, %s6, %s4
  $region1: #{tpu_custom_call.1} parent=0
    #allocation2 [shape = 'u8[4096]{0}', space=vmem, size = 0x1000, scoped, tag = 'input window, operand 0, single buffered']
    #allocation3 [shape = 's32[1]{0}', space=sflag, size = 0x4, scoped, tag = 'scoped memory for tpu_custom_call.1']
    #allocation4 [shape = 'u8[4096]{0}', space=vmem, size = 0x1000, scoped, tag = 'input window, operand 1, single buffered']
    #allocation5 [shape = 's32[1]{0}', space=sflag, size = 0x4, scoped, tag = 'scoped memory for tpu_custom_call.1']
    #allocation6 [shape = 'u8[16384]{0}', space=vmem, size = 0x4000, scoped, tag = 'input window, operand 2, single buffered']
    %8 = vsyncpa [#allocation3], 0
    %9 = vsyncpa [#allocation5], 0
    // Predicated region
    $region2: #{tpu_custom_call.1} parent=1 // pred_check
      _
    $region3: #{tpu_custom_call.1} parent=1 // pred_check_branch
      %11 = sbr.rel (0) target = $region5
    $region4: #{tpu_custom_call.1} parent=1 // pred_region
      %s13 = ssub.s32 128, 128
      %14 = vsyncadd [#allocation3], %s13
      %s16 = sshll.u32 [#allocation2], 4
      %s17 = int_to_ptr.vmem [resolvable:$true] %s16
      %19 = dma.hbm_to_vmem [thread:$0]  %s0, 128, %s17, [#allocation3]
    $region5: #{tpu_custom_call.1} parent=1 // pred_fallthru
      _
    // Predicated region
    $region6: #{tpu_custom_call.1} parent=1 // pred_check
      _
    $region7: #{tpu_custom_call.1} parent=1 // pred_check_branch
      %21 = sbr.rel (0) target = $region9
    $region8: #{tpu_custom_call.1} parent=1 // pred_region
      %s23 = ssub.s32 128, 128
      %24 = vsyncadd [#allocation5], %s23
      %s26 = sshll.u32 [#allocation4], 4
      %s27 = int_to_ptr.vmem [resolvable:$true] %s26
      %29 = dma.hbm_to_vmem [thread:$0]  %s1, 128, %s27, [#allocation5]
    $region9: #{tpu_custom_call.1} parent=1 // pred_fallthru
      _
    // Predicated region
    $region10: #{tpu_custom_call.1} parent=1 // pred_check
      _
    $region11: #{tpu_custom_call.1} parent=1 // pred_check_branch
      %31 = sbr.rel (0) target = $region13
    $region12: #{tpu_custom_call.1} parent=1 // pred_region
      %s33 = ssub.s32 512, 512
      %34 = vsyncadd [#allocation5], %s33
      %s35 = sshll.u32 [#allocation6], 4
      %s36 = int_to_ptr.vmem [resolvable:$true] %s35
      %41 = dma.hbm_to_vmem [thread:$0]  %s2, 512, %s36, [#allocation5], 128, 128, 8
    $region13: #{tpu_custom_call.1} parent=1 // pred_fallthru
      _
    // Predicated region
    $region14: #{tpu_custom_call.1} parent=1 // pred_check
      _
    $region15: #{tpu_custom_call.1} parent=1 // pred_check_branch
      %43 = sbr.rel (0) target = $region17
    $region16: #{tpu_custom_call.1} parent=1 // pred_region
      %44 = dma.done [#allocation3], 128
    $region17: #{tpu_custom_call.1} parent=1 // pred_fallthru
      _
    // Predicated region
    $region18: #{tpu_custom_call.1} parent=1 // pred_check
      _
    $region19: #{tpu_custom_call.1} parent=1 // pred_check_branch
      %46 = sbr.rel (0) target = $region21
    $region20: #{tpu_custom_call.1} parent=1 // pred_region
      %47 = dma.done [#allocation5], 128
    $region21: #{tpu_custom_call.1} parent=1 // pred_fallthru
      _
    // Predicated region
    $region22: #{tpu_custom_call.1} parent=1 // pred_check
      _
    $region23: #{tpu_custom_call.1} parent=1 // pred_check_branch
      %49 = sbr.rel (0) target = $region25
    $region24: #{tpu_custom_call.1} parent=1 // pred_region
      %50 = dma.done [#allocation5], 512
    $region25: #{tpu_custom_call.1} parent=1 // pred_fallthru
      _
    %v51 = vld [vmem:[#allocation2] sm:$0xff]
    %v52 = vld [vmem:[#allocation4] sm:$0xff]
    %v53 = vsub.f32 %v51, %v52
    %v54 = vld [vmem:[#allocation6] sm:$0xff]
    %v55 = vld [vmem:[#allocation6 + $0x8] sm:$0xff]
    %v56 = vld [vmem:[#allocation6 + $0x10] sm:$0xff]
    %v57 = vld [vmem:[#allocation6 + $0x18] sm:$0xff]
    %vm58 = vcmask 261120
    %v60 = vsel %vm58, %v53, 0
    %62 = vmatprep.subr.mxu0 0.0
    %63 = vmatpush1.msra.mxu0 %v54
    %64 = vmatprep.subr.mxu0 0.0
    %65 = vmatpush1.msra.mxu0 %v55
    %66 = vmatprep.subr.mxu0 0.0
    %67 = vmatpush1.msra.mxu0 %v56
    %68 = vmatprep.subr.mxu0 0.0
    %69 = vmatpush1.msra.mxu0 %v57
    %70 = vmatprep.subr.mxu0 0.0
    %71 = vmatpush1.msra.mxu0 0.0
    %72 = vmatprep.subr.mxu0 0.0
    %73 = vmatpush1.msra.mxu0 0.0
    %74 = vmatprep.subr.mxu0 0.0
    %75 = vmatpush1.msra.mxu0 0.0
    %76 = vmatprep.subr.mxu0 0.0
    %77 = vmatpush1.msra.mxu0 0.0
    %78 = vmatprep.subr.mxu0 0.0
    %79 = vmatpush1.msra.mxu0 0.0
    %80 = vmatprep.subr.mxu0 0.0
    %81 = vmatpush1.msra.mxu0 0.0
    %82 = vmatprep.subr.mxu0 0.0
    %83 = vmatpush1.msra.mxu0 0.0
    %84 = vmatprep.subr.mxu0 0.0
    %85 = vmatpush1.msra.mxu0 0.0
    %86 = vmatprep.subr.mxu0 0.0
    %87 = vmatpush1.msra.mxu0 0.0
    %88 = vmatprep.subr.mxu0 0.0
    %89 = vmatpush1.msra.mxu0 0.0
    %90 = vmatprep.subr.mxu0 0.0
    %91 = vmatpush1.msra.mxu0 0.0
    %92 = vmatprep.subr.mxu0 0.0
    %93 = vmatpush1.msra.mxu0 0.0
    %94 = vmatprep.subr.mxu0 0.0
    %95 = vmatpush1.msra.mxu0 0.0
    %96 = vmatprep.subr.mxu0 0.0
    %97 = vmatpush1.msra.mxu0 0.0
    %98 = vmatprep.subr.mxu0 0.0
    %99 = vmatpush1.msra.mxu0 0.0
    %100 = vmatprep.subr.mxu0 0.0
    %101 = vmatpush1.msra.mxu0 0.0
    %102 = vmatprep.subr.mxu0 0.0
    %103 = vmatpush1.msra.mxu0 0.0
    %104 = vmatprep.subr.mxu0 0.0
    %105 = vmatpush1.msra.mxu0 0.0
    %106 = vmatprep.subr.mxu0 0.0
    %107 = vmatpush1.msra.mxu0 0.0
    %108 = vmatprep.subr.mxu0 0.0
    %109 = vmatpush1.msra.mxu0 0.0
    %110 = vmatprep.subr.mxu0 0.0
    %111 = vmatpush1.msra.mxu0 0.0
    %112 = vmatprep.subr.mxu0 0.0
    %113 = vmatpush1.msra.mxu0 0.0
    %114 = vmatprep.subr.mxu0 0.0
    %115 = vmatpush1.msra.mxu0 0.0
    %116 = vmatprep.subr.mxu0 0.0
    %117 = vmatpush1.msra.mxu0 0.0
    %118 = vmatprep.subr.mxu0 0.0
    %119 = vmatpush1.msra.mxu0 0.0
    %120 = vmatprep.subr.mxu0 0.0
    %121 = vmatpush1.msra.mxu0 0.0
    %122 = vmatprep.subr.mxu0 0.0
    %123 = vmatpush1.msra.mxu0 0.0
    %124 = vmatprep.subr.mxu0 0.0
    %125 = vmatpush1.msra.mxu0 0.0
    %126 = vmatprep.mubr.f32.mxu0 0.0
    %127 = vmatmul.mubr.f32.gmra.mrb[0].mxu0 %v60
    %v128 = vpop.f32.mrb[0].mxu0
    %v129 = vadd.f32 0.0, %v128
    %v130 = vpop.f32.mrb[0].mxu0
    %131 = vdwg.mxu0
    %v132 = vmul.f32 %v129, %v53
    %v133 = vsel %vm58, %v132, 0.0
    %134 = vadd.xlane.f32.xlu0 %v133
    %v135 = vpop.xlane.xlu0 %134
    %vm136 = vcmask 7168
    %137 = vst.msk [vmem:[%s3] sm:$0xff] %vm136, %v135
    // Predicated region
    $region26: #{tpu_custom_call.1} parent=1 // pred_check
      _
    $region27: #{tpu_custom_call.1} parent=1 // pred_check_branch
      %139 = sbr.rel (0) target = $region29
    $region28: #{tpu_custom_call.1} parent=1 // pred_region
      _
    $region29: #{tpu_custom_call.1} parent=1 // pred_fallthru
      _
    // Predicated region
    $region30: #{tpu_custom_call.1} parent=1 // pred_check
      _
    $region31: #{tpu_custom_call.1} parent=1 // pred_check_branch
      %141 = sbr.rel (0) target = $region33
    $region32: #{tpu_custom_call.1} parent=1 // pred_region
      _
    $region33: #{tpu_custom_call.1} parent=1 // pred_fallthru
      _
    %142 = vsyncpa [#allocation3], 1
    %143 = vsyncpa [#allocation5], 1

</llo_original>
